<compile_context>
chip_gen: v6e
topology: v6e:2x2x1
jax: 0.10.0
libtpu: 0.0.40
codegen_flags: <defaults>
</compile_context>

<pallas_src>
import itertools
import numpy as np
import jax
import jax.numpy as jnp
from jax.experimental import pallas as pl
from jax.experimental.pallas import tpu as pltpu

LANE = 128   # pad channel / contraction dims to the 128-lane width
EPS = 1e-5


# ------------------------------ Pallas kernels ------------------------------ #
def _mm_bias_relu_kernel(x_ref, w_ref, b_ref, o_ref, acc_ref):
    """Tiled matmul with f32 VMEM accumulator; bias + ReLU in the finalize."""
    @pl.when(pl.program_id(1) == 0)
    def _():
        acc_ref[...] = jnp.zeros_like(acc_ref)

    acc_ref[...] += jnp.dot(x_ref[...], w_ref[...],
                            preferred_element_type=jnp.float32)

    @pl.when(pl.program_id(1) == pl.num_programs(1) - 1)
    def _():
        o_ref[...] = jnp.maximum(acc_ref[...] + b_ref[...], 0.0).astype(o_ref.dtype)


def _mm_bias_res_relu_kernel(x_ref, w_ref, b_ref, r_ref, o_ref, acc_ref):
    """Same, plus an f32 residual (shortcut branch) added before the ReLU."""
    @pl.when(pl.program_id(1) == 0)
    def _():
        acc_ref[...] = jnp.zeros_like(acc_ref)

    acc_ref[...] += jnp.dot(x_ref[...], w_ref[...],
                            preferred_element_type=jnp.float32)

    @pl.when(pl.program_id(1) == pl.num_programs(1) - 1)
    def _():
        o_ref[...] = jnp.maximum(
            acc_ref[...] + b_ref[...] + r_ref[...], 0.0).astype(o_ref.dtype)


def fused_linear(x, w, b, residual, *, out_dtype, tn, tk, vmem_limit):
    """x: [Np, Kc] bf16, w: [Kc, Cp] bf16, b: [1, Cp] f32,
    residual: [Np, Cp] f32 or None -> [Np, Cp] out_dtype.

    Grid = (Np//tn "parallel", Kc//tk "arbitrary").  Output block is invariant
    over the contraction axis (accumulator pattern); bias/residual/ReLU fused
    into the finalize.  Np % tn == 0, Kc % tk == 0, tk % 128 == 0, Cp % 128 == 0.
    """
    Np, Kc = x.shape
    Cp = w.shape[1]
    grid = (Np // tn, Kc // tk)

    in_specs = [
        pl.BlockSpec((tn, tk), lambda i, k: (i, k)),
        pl.BlockSpec((tk, Cp), lambda i, k: (k, 0)),
        pl.BlockSpec((1, Cp), lambda i, k: (0, 0)),   # grid-invariant bias
    ]
    args = [x, w, b]
    if residual is not None:
        in_specs.append(pl.BlockSpec((tn, Cp), lambda i, k: (i, 0)))
        args.append(residual)
        kernel = _mm_bias_res_relu_kernel
    else:
        kernel = _mm_bias_relu_kernel

    out_bytes = jnp.dtype(out_dtype).itemsize
    bytes_accessed = (x.size * 2 + w.size * 2 + b.size * 4 + Np * Cp * out_bytes
                      + (residual.size * 4 if residual is not None else 0))

    return pl.pallas_call(
        kernel,
        out_shape=jax.ShapeDtypeStruct((Np, Cp), out_dtype),
        grid_spec=pltpu.PrefetchScalarGridSpec(
            num_scalar_prefetch=0,
            grid=grid,
            in_specs=in_specs,
            out_specs=pl.BlockSpec((tn, Cp), lambda i, k: (i, 0)),
            scratch_shapes=[pltpu.VMEM((tn, Cp), jnp.float32)],
        ),
        compiler_params=pltpu.CompilerParams(
            dimension_semantics=("parallel", "arbitrary"),
            vmem_limit_bytes=int(vmem_limit),
        ),
        cost_estimate=pl.CostEstimate(
            flops=int(2 * Np * Kc * Cp),
            transcendentals=0,
            bytes_accessed=int(bytes_accessed),
        ),
    )(*args)


def jnp_fused_linear(x, w, b, residual, *, out_dtype, tn, tk, vmem_limit):
    """Numerics-matched reference path (same bf16 operands, jnp matmul)."""
    del tn, tk, vmem_limit
    acc = jnp.dot(x.astype(jnp.float32), w.astype(jnp.float32)) + b
    if residual is not None:
        acc = acc + residual
    return jnp.maximum(acc, 0.0).astype(out_dtype)


# --------------------------------- glue ------------------------------------ #
def _round_up(v, m):
    return ((v + m - 1) // m) * m


def _pad2d(x, rows, cols):
    r, c = x.shape
    return jnp.pad(x, ((0, rows - r), (0, cols - c)))


def _vmem_budget():
    """Scoped-VMEM budget derived from the actual generation (v7x: 64 MiB)."""
    try:
        cap = pltpu.get_tpu_info().vmem_capacity_bytes
    except Exception:
        cap = 64 * 1024 * 1024            # most restrictive generation (v7x)
    return int(cap * 0.7)                 # leave headroom for Mosaic internals


def _choose_tiles(N, Kc, Cp, has_residual, out_bytes, budget):
    """Pick (tn, tk): biggest tiles that fit the VMEM budget, >=2 N tiles."""
    def usage(tn, tk):
        u = 2 * tn * tk * 2           # x tile (bf16), double-buffered
        u += 2 * tk * Cp * 2          # weight tile (bf16), double-buffered
        u += 2 * 1 * Cp * 4           # bias
        u += 2 * tn * Cp * out_bytes  # output tile, double-buffered
        u += tn * Cp * 4              # f32 accumulator scratch
        if has_residual:
            u += 2 * tn * Cp * 4      # residual tile (f32)
        return u

    # N tile: as large as possible, multiple of 16 (bf16 sublane packing), but
    # guarantee >=2 tiles so "parallel" can shard across v7x's 2 TensorCores.
    tn = 512
    while tn > 16 and _round_up(N, tn) // tn < 2:
        tn //= 2

    # K tile: largest multiple of 128 dividing Kc that fits; shrink tn if needed.
    kb = Kc // 128
    divisors = [d * 128 for d in range(kb, 0, -1) if kb % d == 0]
    tk = None
    while tk is None:
        tk = next((d for d in divisors if usage(tn, d) <= budget), None)
        if tk is None:
            if tn > 16:
                tn //= 2
            else:
                tk = 128   # TODO(synk): also tile Cp for extreme channel counts
    return tn, tk


def kernel_offsets(ks=3, dilation=1, D=3):
    r = range(-(ks // 2), ks // 2 + 1)
    return np.array(list(itertools.product(r, repeat=D)), dtype=np.int64) * dilation


def build_kernel_map(coords_np, offsets_np):
    """Hash-based neighbor table: idx [N, K] int32 (0 if missing), mask [N, K] bool."""
    lut = {tuple(int(v) for v in c): i for i, c in enumerate(coords_np)}
    K, N = offsets_np.shape[0], coords_np.shape[0]
    idx = np.zeros((N, K), np.int32)
    mask = np.zeros((N, K), bool)
    for n, c in enumerate(coords_np):
        for k, off in enumerate(offsets_np):
            key = (int(c[0]), int(c[1] + off[0]), int(c[2] + off[1]), int(c[3] + off[2]))
            j = lut.get(key)
            if j is not None:
                idx[n, k] = j
                mask[n, k] = True
    return jnp.asarray(idx), jnp.asarray(mask)


def gather_patches(feats, idx, mask):
    """feats [N, C] -> [N, K*C] neighborhoods (NaN-safe masking, keeps dtype)."""
    g = jnp.take(feats, idx, axis=0)                         # [N, K, C]
    g = jnp.where(mask[:, :, None], g, jnp.zeros((), feats.dtype))
    N, K, C = g.shape
    return g.reshape(N, K * C)


def fold_bn(gamma, beta, mean, var, eps=EPS):
    scale = gamma / jnp.sqrt(var + eps)
    return scale, beta - mean * scale


def residual_block_forward(feats, idx, mask, params, *, use_pallas=True,
                           tile_override=None):
    """ReLU( BN2(Conv2(ReLU(BN1(Conv1(x))))) + shortcut(x) ), stride=1 path."""
    # TODO(synk): stride>1 (coordinate downsampling / new coord map) not implemented.
    run = fused_linear if use_pallas else jnp_fused_linear
    N, inc = feats.shape
    w1 = params["w1"]
    K, _, outc = w1.shape
    Cp = _round_up(outc, LANE)
    budget = _vmem_budget()

    feats_bf = feats.astype(jnp.bfloat16)

    # ---- conv1 + BN1 (folded) + ReLU: [N, K*inc] @ [K*inc, outc] -> bf16 ----
    # (weight folding/padding is constant per model; cache it outside the hot
    #  path in a real deployment)
    s1, t1 = fold_bn(*params["bn1"])
    w1f = (w1 * s1[None, None, :]).reshape(K * inc, outc)
    Kc1 = _round_up(K * inc, LANE)
    x1 = gather_patches(feats_bf, idx, mask)                 # [N, K*inc] bf16
    tn1, tk1 = tile_override or _choose_tiles(N, Kc1, Cp, False, 2, budget)
    Np1 = _round_up(N, tn1)
    h = run(
        _pad2d(x1, Np1, Kc1),
        _pad2d(w1f, Kc1, Cp).astype(jnp.bfloat16),
        _pad2d(t1.reshape(1, outc), 1, Cp).astype(jnp.float32),
        None,
        out_dtype=jnp.bfloat16, tn=tn1, tk=tk1, vmem_limit=budget,
    )[:N, :outc]                                             # stays bf16

    # ---- shortcut branch, kept in f32 (precision-faithful skip connection) ----
    if params["wds"] is None:                                # identity shortcut
        sc = feats
    else:                                                    # 1x1 conv + BN shortcut
        sds, tds = fold_bn(*params["bnds"])
        sc = feats @ (params["wds"] * sds[None, :]) + tds[None, :]

    # ---- conv2 + BN2 (folded) + residual add + ReLU fused in the epilogue ----
    s2, t2 = fold_bn(*params["bn2"])
    w2f = (params["w2"] * s2[None, None, :]).reshape(K * outc, outc)
    Kc2 = _round_up(K * outc, LANE)
    x2 = gather_patches(h, idx, mask)                        # [N, K*outc] bf16
    tn2, tk2 = tile_override or _choose_tiles(N, Kc2, Cp, True, 4, budget)
    Np2 = _round_up(N, tn2)
    out = run(
        _pad2d(x2, Np2, Kc2),
        _pad2d(w2f, Kc2, Cp).astype(jnp.bfloat16),
        _pad2d(t2.reshape(1, outc), 1, Cp).astype(jnp.float32),
        _pad2d(sc, Np2, Cp).astype(jnp.float32),
        out_dtype=jnp.float32, tn=tn2, tk=tk2, vmem_limit=budget,
    )[:N, :outc]
    return out


def residual_block_ref_f32(feats, idx, mask, params):
    """Plain f32 module-semantics reference (no folding / fusion / bf16)."""
    def conv(f, w):
        p = jnp.take(f, idx, axis=0)                         # [N, K, Cin]
        p = jnp.where(mask[:, :, None], p, 0.0)
        return jnp.einsum("nki,kio->no", p, w)

    def bn(x, stats):
        g, b, m, v = stats
        return (x - m) / jnp.sqrt(v + EPS) * g + b

    h = jax.nn.relu(bn(conv(feats, params["w1"]), params["bn1"]))
    y = bn(conv(h, params["w2"]), params["bn2"])
    d = feats if params["wds"] is None else bn(feats @ params["wds"], params["bnds"])
    return jax.nn.relu(y + d)


# --------------------------------- main ------------------------------------- #
if __name__ == "__main__":
    inc, outc, ks, stride, dilation, D = 4, 16, 3, 1, 1, 3
    K = ks ** D
    batch, pts_per_batch = 2, 32
    N = batch * pts_per_batch

    key = jax.random.PRNGKey(0)
    keys = jax.random.split(key, 12)

    # sparse coords: per batch item, 32 unique voxels from a 4x4x4 grid
    voxel_grid = np.array(list(itertools.product(range(4), repeat=3)), dtype=np.int64)
    coords_list = []
    for b in range(batch):
        perm = np.asarray(jax.random.permutation(keys[b], voxel_grid.shape[0]))[:pts_per_batch]
        coords_list.append(
            np.concatenate([np.full((pts_per_batch, 1), b, np.int64),
                            voxel_grid[perm]], axis=1))
    coords = np.concatenate(coords_list, axis=0)             # [N, 4]

    feats = jax.random.normal(keys[2], (N, inc), jnp.float32)

    def bn_params(k):
        kg, kb, km, kv = jax.random.split(k, 4)
        return (1.0 + 0.1 * jax.random.normal(kg, (outc,), jnp.float32),
                0.1 * jax.random.normal(kb, (outc,), jnp.float32),
                0.1 * jax.random.normal(km, (outc,), jnp.float32),
                jnp.abs(jax.random.normal(kv, (outc,), jnp.float32)) + 0.5)

    identity_shortcut = (inc == outc and stride == 1)
    params = dict(
        w1=0.1 * jax.random.normal(keys[3], (K, inc, outc), jnp.float32),
        bn1=bn_params(keys[4]),
        w2=0.1 * jax.random.normal(keys[5], (K, outc, outc), jnp.float32),
        bn2=bn_params(keys[6]),
        wds=None if identity_shortcut
        else 0.1 * jax.random.normal(keys[7], (inc, outc), jnp.float32),
        bnds=None if identity_shortcut else bn_params(keys[8]),
    )
    # TODO(synk): inference-mode BatchNorm only (running stats folded into
    #             scale/bias); training-mode batch statistics not implemented.

    offsets = kernel_offsets(ks, dilation, D)
    idx, mask = build_kernel_map(coords, offsets)

    # Pallas path, auto-chosen tiles (single contraction step at these sizes).
    out = residual_block_forward(feats, idx, mask, params, use_pallas=True)
    out = jax.block_until_ready(out)

    # Pallas path again with tiny forced tiles to exercise the multi-step
    # contraction (grid K axis > 1, accumulator init/finalize) on hardware.
    out_small = residual_block_forward(feats, idx, mask, params, use_pallas=True,
                                       tile_override=(16, 128))
    out_small = jax.block_until_ready(out_small)

    # 1) kernel check: identical bf16 operands, jnp matmul instead of Pallas
    ref_bf16 = residual_block_forward(feats, idx, mask, params, use_pallas=False)
    np.testing.assert_allclose(np.asarray(out), np.asarray(ref_bf16),
                               rtol=1e-2, atol=1e-2)
    np.testing.assert_allclose(np.asarray(out_small), np.asarray(ref_bf16),
                               rtol=1e-2, atol=1e-2)

    # 2) structural check: plain f32 module-semantics reference
    #    (looser tolerance accounts for the bf16 cast on the kernel path)
    ref_f32 = residual_block_ref_f32(feats, idx, mask, params)
    np.testing.assert_allclose(np.asarray(out), np.asarray(ref_f32),
                               rtol=1e-1, atol=1e-1)

    print("KERNEL_OK")
</pallas_src>

<mosaic_0001>
module attributes {stable_mosaic.version = 11 : i64} {
  func.func @_mm_bias_relu_kernel(%arg0: i32, %arg1: i32, %arg2: memref<32x128xbf16, #tpu.memory_space<vmem>>, %arg3: memref<128x128xbf16, #tpu.memory_space<vmem>>, %arg4: memref<1x128xf32, #tpu.memory_space<vmem>>, %arg5: memref<32x128xbf16, #tpu.memory_space<vmem>>, %arg6: memref<32x128xf32, #tpu.memory_space<vmem>>) attributes {dimension_semantics = [#tpu.dimension_semantics<parallel>, #tpu.dimension_semantics<arbitrary>], iteration_bounds = array<i64: 2, 1>, scalar_prefetch = 0 : i64, scratch_operands = 1 : i64, tpu.core_type = #tpu.core_type<tc>, window_params = [{transform_indices = @transform_0, window_bounds = array<i64: 32, 128>}, {transform_indices = @transform_1, window_bounds = array<i64: 128, 128>}, {pipeline_mode = #tpu.pipeline_mode<synchronous>, transform_indices = @transform_2, window_bounds = array<i64: 1, 128>}, {transform_indices = @transform_3, window_bounds = array<i64: 32, 128>}]} {
    %c0_i32 = arith.constant 0 : i32
    %0 = arith.cmpi eq, %arg1, %c0_i32 : i32
    %1 = arith.extui %0 : i1 to i32
    %c0_i32_0 = arith.constant 0 : i32
    %2 = arith.cmpi ne, %1, %c0_i32_0 : i32
    scf.if %2 {
      %cst_10 = arith.constant 0.000000e+00 : f32
      %12 = vector.broadcast %cst_10 : f32 to vector<32x128xf32>
      %c0_11 = arith.constant 0 : index
      %c0_12 = arith.constant 0 : index
      %13 = vector.load %arg6[%c0_11, %c0_12] : memref<32x128xf32, #tpu.memory_space<vmem>>, vector<32x128xf32>
      tpu.vector_store %arg6[%c0_11, %c0_12], %12 {strides = array<i32>} : memref<32x128xf32, #tpu.memory_space<vmem>>, vector<32x128xf32>,
    } else {
    }
    %c0 = arith.constant 0 : index
    %c0_1 = arith.constant 0 : index
    %3 = vector.load %arg6[%c0, %c0_1] : memref<32x128xf32, #tpu.memory_space<vmem>>, vector<32x128xf32>
    %c0_2 = arith.constant 0 : index
    %c0_3 = arith.constant 0 : index
    %4 = vector.load %arg2[%c0_2, %c0_3] : memref<32x128xbf16, #tpu.memory_space<vmem>>, vector<32x128xbf16>
    %c0_4 = arith.constant 0 : index
    %c0_5 = arith.constant 0 : index
    %5 = vector.load %arg3[%c0_4, %c0_5] : memref<128x128xbf16, #tpu.memory_space<vmem>>, vector<128x128xbf16>
    %cst = arith.constant dense<0.000000e+00> : vector<32x128xf32>
    %6 = tpu.matmul %4, %5, %cst {dimension_numbers = #tpu.dot_dimension_numbers<[1], [0], [0], [1], [0, 0, 1, 1], [], []>} : vector<32x128xbf16>, vector<128x128xbf16>, vector<32x128xf32> -> vector<32x128xf32>
    %7 = arith.addf %3, %6 : vector<32x128xf32>
    %c0_6 = arith.constant 0 : index
    %c0_7 = arith.constant 0 : index
    %8 = vector.load %arg6[%c0_6, %c0_7] : memref<32x128xf32, #tpu.memory_space<vmem>>, vector<32x128xf32>
    tpu.vector_store %arg6[%c0_6, %c0_7], %7 {strides = array<i32>} : memref<32x128xf32, #tpu.memory_space<vmem>>, vector<32x128xf32>,
    %c0_i32_8 = arith.constant 0 : i32
    %9 = arith.cmpi eq, %arg1, %c0_i32_8 : i32
    %10 = arith.extui %9 : i1 to i32
    %c0_i32_9 = arith.constant 0 : i32
    %11 = arith.cmpi ne, %10, %c0_i32_9 : i32
    scf.if %11 {
      %c0_10 = arith.constant 0 : index
      %c0_11 = arith.constant 0 : index
      %12 = vector.load %arg6[%c0_10, %c0_11] : memref<32x128xf32, #tpu.memory_space<vmem>>, vector<32x128xf32>
      %c0_12 = arith.constant 0 : index
      %c0_13 = arith.constant 0 : index
      %13 = vector.load %arg4[%c0_12, %c0_13] : memref<1x128xf32, #tpu.memory_space<vmem>>, vector<1x128xf32>
      %14 = vector.broadcast %13 : vector<1x128xf32> to vector<32x128xf32>
      %15 = arith.addf %12, %14 : vector<32x128xf32>
      %cst_14 = arith.constant 0.000000e+00 : f32
      %16 = vector.broadcast %cst_14 : f32 to vector<32x128xf32>
      %17 = arith.maximumf %15, %16 : vector<32x128xf32>
      %18 = arith.truncf %17 : vector<32x128xf32> to vector<32x128xbf16>
      %c0_15 = arith.constant 0 : index
      %c0_16 = arith.constant 0 : index
      %19 = vector.load %arg5[%c0_15, %c0_16] : memref<32x128xbf16, #tpu.memory_space<vmem>>, vector<32x128xbf16>
      tpu.vector_store %arg5[%c0_15, %c0_16], %18 {strides = array<i32>} : memref<32x128xbf16, #tpu.memory_space<vmem>>, vector<32x128xbf16>,
    } else {
    }
    return
  }
  func.func @transform_0(%arg0: i32, %arg1: i32) -> (i32, i32) {
    %c0_i32 = arith.constant 0 : i32
    return %arg0, %arg1 : i32, i32
  }
  func.func @transform_1(%arg0: i32, %arg1: i32) -> (i32, i32) {
    %c0_i32 = arith.constant 0 : i32
    %c0_i32_0 = arith.constant 0 : i32
    return %arg1, %c0_i32 : i32, i32
  }
  func.func @transform_2(%arg0: i32, %arg1: i32) -> (i32, i32) {
    %c0_i32 = arith.constant 0 : i32
    %c0_i32_0 = arith.constant 0 : i32
    %c0_i32_1 = arith.constant 0 : i32
    return %c0_i32, %c0_i32_0 : i32, i32
  }
  func.func @transform_3(%arg0: i32, %arg1: i32) -> (i32, i32) {
    %c0_i32 = arith.constant 0 : i32
    %c0_i32_0 = arith.constant 0 : i32
    return %arg0, %c0_i32 : i32, i32
  }
}

</mosaic_0001>

<llo_original>
// kernel: tpu_custom_call.1
$region0: #{tpu_custom_call.1}
  #allocation0 [shape = 'u32[]', space=smem, size = 0x4, offset = 0x4, fixed_abs, tag = 'smem constant byte address 0x4 - core index']
  #allocation1 [shape = 'u32[144,128]{1,0:T(1,128)}', space=vmem, size = 0x12000, scoped, tag = 'internal scratch']
  #allocation2 [shape = 'f32[32,128]{1,0:T(8,128)}', space=vmem, size = 0x4000, scoped, tag = 'scratch operand']
  %s0 = inlined_call_operand.hbm [shape: bf16[64,128], index: 0, kind: input, shape index: {}]
  %s1 = inlined_call_operand.hbm [shape: bf16[128,128], index: 1, kind: input, shape index: {}]
  %s2 = inlined_call_operand.vmem [shape: f32[1,128], index: 2, kind: input, shape index: {}]
  %s3 = inlined_call_operand.hbm [shape: bf16[64,128], index: 3, kind: output, shape index: {}]
  %s4 = sld [smem:[#allocation0]]
  $region61: #{tpu_custom_call.1} parent=0
    _
  %s6 = ssub.s32 1, %s4
  %s7 = scalar_select 0, %s6, %s4
  $region1: #{tpu_custom_call.1} parent=0
    #allocation3 [shape = 'u8[16384]{0}', space=vmem, size = 0x4000, scoped, tag = 'input window, operand 0']
    #allocation4 [shape = 's32[2]{0}', space=sflag, size = 0x8, scoped, tag = 'scoped memory for tpu_custom_call.1']
    #allocation5 [shape = 's32[2]{0}', space=sflag, size = 0x8, scoped, tag = 'scoped memory for tpu_custom_call.1']
    #allocation6 [shape = 'u8[32768]{0}', space=vmem, size = 0x8000, scoped, tag = 'input window, operand 1, single buffered']
    #allocation7 [shape = 's32[1]{0}', space=sflag, size = 0x4, scoped, tag = 'scoped memory for tpu_custom_call.1']
    #allocation8 [shape = 'u8[16384]{0}', space=vmem, size = 0x4000, scoped, tag = 'output window, operand 0']
    %8 = vsyncpa [#allocation4], 0
    %s9 = scalar_lea.sflag [#allocation4], 1
    %10 = vsyncpa %s9, 0
    %11 = vsyncpa [#allocation7], 0
    %12 = vsyncpa [#allocation5], 0
    %s13 = scalar_lea.sflag [#allocation5], 1
    %14 = vsyncpa %s13, 0
    loop: start=0, step=1, limit=4
    $region2: #{tpu_custom_call.1} parent=1 // loop_pre_header
      _
    $region3: #{tpu_custom_call.1} parent=1 // loop_header
      %s16 = sphi 0, %s20
      %p17 = scmp.ge.s32.totalorder %s16, 4
      %s23 = sphi 0, %s35
      %s24 = sphi 0, %s31
      %s25 = sphi 0, %s23
      %s26 = sphi 0, %s24
      %s27 = sphi 0, %s25
      %s28 = sphi 0, %s26
      %s40 = sphi 0, %s42
      %s43 = sphi 0, %s40
      %s44 = sphi 0, %s43
      %s60 = sphi 0, %s44
      %s66 = sphi 0, %s68
      %s69 = sphi 0, %s66
      %s70 = sphi 0, %s69
      %s86 = sphi 0, %s70
      %s90 = sphi 0, %s90
      %s92 = sphi 0, %s90
      %s93 = sphi 0, %s92
      %s107 = sphi 0, %s93
      %s113 = sphi 0, %s115
      %s116 = sphi 0, %s113
      %s117 = sphi 0, %s116
      %s133 = sphi 0, %s117
    $region4: #{tpu_custom_call.1} parent=1 // loop_header_branch
      %19 = sbr.rel (%p17) target = $region8
    $region5: #{tpu_custom_call.1} parent=1 // loop_body
      %s21 = ssub.s32 %s16, 1
      %s22 = ssub.s32 %s16, 2
      %s29 = sadd.s32 1, %s24
      %p30 = scmp.ge.s32.totalorder %s29, 1
      %s31 = scalar_select %p30, 0, %s29
      %s32 = sadd.s32 1, %s23
      %s33 = scalar_select %p30, %s32, %s23
      %p34 = scmp.ge.s32.totalorder %s33, 2
      %s35 = scalar_select %p34, 0, %s33
      %s36 = ssub.s32 %s23, %s35
      %s37 = ssub.s32 %s24, %s31
      %s38 = sor.u32 %s36, %s37
      %p39 = scmp.eq.s32.totalorder %s38, 0
      %s41 = sadd.s32 %s40, 1
      %s42 = scalar_select %p39, %s40, %s41
      %p45 = pneg %p39
      %p46 = scmp.eq.s32.totalorder %s16, 1
      %p47 = por %p45, %p46
      %p48 = scmp.ne.s32.totalorder %s40, %s43
      %p49 = scmp.eq.s32.totalorder %s16, 0
      %p50 = por %p48, %p49
      %p51 = scmp.ne.s32.totalorder %s40, %s43
      %p52 = scmp.eq.s32.totalorder %s21, 1
      %p53 = por %p51, %p52
      %p54 = scmp.ne.s32.totalorder %s43, %s44
      %p55 = scmp.eq.s32.totalorder %s21, 0
      %p56 = por %p54, %p55
      %p57 = scmp.ne.s32.totalorder %s43, %s44
      %p58 = scmp.eq.s32.totalorder %s22, 1
      %p59 = por %p57, %p58
      %p61 = scmp.ne.s32.totalorder %s44, %s60
      %p62 = scmp.eq.s32.totalorder %s22, 0
      %p63 = por %p61, %p62
      %s64 = ssub.s32 %s24, %s31
      %p65 = scmp.eq.s32.totalorder %s64, 0
      %s67 = sadd.s32 %s66, 1
      %s68 = scalar_select %p65, %s66, %s67
      %p71 = pneg %p65
      %p72 = scmp.eq.s32.totalorder %s16, 1
      %p73 = por %p71, %p72
      %p74 = scmp.ne.s32.totalorder %s66, %s69
      %p75 = scmp.eq.s32.totalorder %s16, 0
      %p76 = por %p74, %p75
      %p77 = scmp.ne.s32.totalorder %s66, %s69
      %p78 = scmp.eq.s32.totalorder %s21, 1
      %p79 = por %p77, %p78
      %p80 = scmp.ne.s32.totalorder %s69, %s70
      %p81 = scmp.eq.s32.totalorder %s21, 0
      %p82 = por %p80, %p81
      %p83 = scmp.ne.s32.totalorder %s69, %s70
      %p84 = scmp.eq.s32.totalorder %s22, 1
      %p85 = por %p83, %p84
      %p87 = scmp.ne.s32.totalorder %s70, %s86
      %p88 = scmp.eq.s32.totalorder %s22, 0
      %p89 = por %p87, %p88
      %s91 = sadd.s32 %s90, 1
      %p94 = scmp.eq.s32.totalorder %s16, 1
      %p95 = scmp.ne.s32.totalorder %s90, %s92
      %p96 = scmp.eq.s32.totalorder %s16, 0
      %p97 = por %p95, %p96
      %p98 = scmp.ne.s32.totalorder %s90, %s92
      %p99 = scmp.eq.s32.totalorder %s21, 1
      %p100 = por %p98, %p99
      %p101 = scmp.ne.s32.totalorder %s92, %s93
      %p102 = scmp.eq.s32.totalorder %s21, 0
      %p103 = por %p101, %p102
      %p104 = scmp.ne.s32.totalorder %s92, %s93
      %p105 = scmp.eq.s32.totalorder %s22, 1
      %p106 = por %p104, %p105
      %p108 = scmp.ne.s32.totalorder %s93, %s107
      %p109 = scmp.eq.s32.totalorder %s22, 0
      %p110 = por %p108, %p109
      %s111 = ssub.s32 %s23, %s35
      %p112 = scmp.eq.s32.totalorder %s111, 0
      %s114 = sadd.s32 %s113, 1
      %s115 = scalar_select %p112, %s113, %s114
      %p118 = pneg %p112
      %p119 = scmp.eq.s32.totalorder %s16, 1
      %p120 = por %p118, %p119
      %p121 = scmp.ne.s32.totalorder %s113, %s116
      %p122 = scmp.eq.s32.totalorder %s16, 0
      %p123 = por %p121, %p122
      %p124 = scmp.ne.s32.totalorder %s113, %s116
      %p125 = scmp.eq.s32.totalorder %s21, 1
      %p126 = por %p124, %p125
      %p127 = scmp.ne.s32.totalorder %s116, %s117
      %p128 = scmp.eq.s32.totalorder %s21, 0
      %p129 = por %p127, %p128
      %p130 = scmp.ne.s32.totalorder %s116, %s117
      %p131 = scmp.eq.s32.totalorder %s22, 1
      %p132 = por %p130, %p131
      %p134 = scmp.ne.s32.totalorder %s117, %s133
      %p135 = scmp.eq.s32.totalorder %s22, 0
      %p136 = por %p134, %p135
      %p137 = scmp.le.s32.totalorder 1, %s16
      %p138 = scmp.lt.s32.totalorder %s16, 3
      %p139 = pnand %p137, %p138
      %p140 = pneg %p139
      // Predicated region
      $region9: #{tpu_custom_call.1} parent=5 // pred_check
        _
      $region10: #{tpu_custom_call.1} parent=5 // pred_check_branch
        %142 = sbr.rel (%p139) target = $region12
      $region11: #{tpu_custom_call.1} parent=5 // pred_region
        %s143 = ssub.s32 %s16, 1
        // Predicated region
        $region13: #{tpu_custom_call.1} parent=11 // pred_check
          %p144 = pneg %p82
        $region14: #{tpu_custom_call.1} parent=11 // pred_check_branch
          %146 = sbr.rel (%p144) target = $region16
        $region15: #{tpu_custom_call.1} parent=11 // pred_region
          %s147 = smul.u32 16, %s26
          %s149 = ssub.s32 1024, 1024
          %150 = vsyncadd [#allocation7], %s149
          %s151 = smul.addr %s147, 64
          %s152 = scalar_lea.hbm %s1, %s151
          %s153 = sshll.u32 [#allocation6], 4
          %s154 = int_to_ptr.vmem [resolvable:$true] %s153
          %159 = dma.hbm_to_vmem [thread:$0]  %s152, 1024, %s154, [#allocation7], 64, 64, 4
        $region16: #{tpu_custom_call.1} parent=11 // pred_fallthru
          _
        // Predicated region
        $region17: #{tpu_custom_call.1} parent=11 // pred_check
          %p160 = pneg %p103
        $region18: #{tpu_custom_call.1} parent=11 // pred_check_branch
          %162 = sbr.rel (%p160) target = $region20
        $region19: #{tpu_custom_call.1} parent=11 // pred_region
          _
        $region20: #{tpu_custom_call.1} parent=11 // pred_fallthru
          _
      $region12: #{tpu_custom_call.1} parent=5 // pred_fallthru
        _
      %p163 = scmp.lt.s32.totalorder %s16, 2
      // Predicated region
      $region21: #{tpu_custom_call.1} parent=5 // pred_check
        %p164 = pneg %p163
      $region22: #{tpu_custom_call.1} parent=5 // pred_check_branch
        %166 = sbr.rel (%p164) target = $region24
      $region23: #{tpu_custom_call.1} parent=5 // pred_region
        // Predicated region
        $region25: #{tpu_custom_call.1} parent=23 // pred_check
          %p167 = pneg %p50
        $region26: #{tpu_custom_call.1} parent=23 // pred_check_branch
          %169 = sbr.rel (%p167) target = $region28
        $region27: #{tpu_custom_call.1} parent=23 // pred_region
          %s170 = sand.u32 %s40, 1
          %s171 = scalar_lea.sflag [#allocation4], %s170
          %s172 = sand.u32 %s40, 1
          %s173 = smul.addr %s172, 16
          %s174 = scalar_lea.vmem [#allocation3], %s173
          %s175 = smul.u32 4, %s23
          %s177 = ssub.s32 256, 256
          %178 = vsyncadd %s171, %s177
          %s179 = sadd.s32 %s24, %s175
          %s180 = smul.addr %s179, 64
          %s181 = scalar_lea.hbm %s0, %s180
          %s182 = sshll.u32 %s174, 4
          %s183 = int_to_ptr.vmem [resolvable:$true] %s182
          %188 = dma.hbm_to_vmem [thread:$0]  %s181, 256, %s183, %s171, 64, 64, 4
        $region28: #{tpu_custom_call.1} parent=23 // pred_fallthru
          _
      $region24: #{tpu_custom_call.1} parent=5 // pred_fallthru
        _
      %p189 = scmp.le.s32.totalorder 1, %s16
      %p190 = scmp.lt.s32.totalorder %s16, 3
      %p191 = pnand %p189, %p190
      %p192 = pneg %p191
      // Predicated region
      $region29: #{tpu_custom_call.1} parent=5 // pred_check
        _
      $region30: #{tpu_custom_call.1} parent=5 // pred_check_branch
        %194 = sbr.rel (%p191) target = $region32
      $region31: #{tpu_custom_call.1} parent=5 // pred_region
        %s195 = ssub.s32 %s16, 1
        %s196 = sand.u32 %s43, 1
        %s197 = scalar_lea.sflag [#allocation4], %s196
        %s198 = sand.u32 %s43, 1
        %s199 = smul.addr %s198, 16
        %s200 = scalar_lea.vmem [#allocation3], %s199
        // Predicated region
        $region33: #{tpu_custom_call.1} parent=31 // pred_check
          %p201 = pneg %p56
        $region34: #{tpu_custom_call.1} parent=31 // pred_check_branch
          %203 = sbr.rel (%p201) target = $region36
        $region35: #{tpu_custom_call.1} parent=31 // pred_region
          %204 = dma.done %s197, 256
        $region36: #{tpu_custom_call.1} parent=31 // pred_fallthru
          _
        // Predicated region
        $region37: #{tpu_custom_call.1} parent=31 // pred_check
          %p205 = pneg %p82
        $region38: #{tpu_custom_call.1} parent=31 // pred_check_branch
          %207 = sbr.rel (%p205) target = $region40
        $region39: #{tpu_custom_call.1} parent=31 // pred_region
          %208 = dma.done [#allocation7], 1024
        $region40: #{tpu_custom_call.1} parent=31 // pred_fallthru
          _
        %s209 = sand.u32 %s43, 1
        %s210 = scalar_lea.sflag [#allocation4], %s209
        %s211 = sand.u32 %s43, 1
        %s212 = smul.addr %s211, 16
        %s213 = scalar_lea.vmem [#allocation3], %s212
        %p214 = pneg %p56
        %p215 = pneg %p53
        %p216 = pneg %p82
        %p217 = pneg %p79
        %p218 = pneg %p103
        %p219 = pneg %p100
        %p220 = pneg %p129
        %p221 = pneg %p126
        %s222 = sand.u32 %s116, 1
        %s223 = scalar_lea.sflag [#allocation5], %s222
        %s224 = sand.u32 %s116, 1
        %s225 = smul.addr %s224, 16
        %s226 = scalar_lea.vmem [#allocation8], %s225
        %s227 = smul.u32 4, %s25
        %s228 = smul.u32 16, %s26
        %s229 = smul.u32 4, %s25
        %p231 = scmp.eq.s32.totalorder %s26, 0
        // Predicated region
        $region41: #{tpu_custom_call.1} parent=31 // pred_check
          %p232 = pneg %p231
        $region42: #{tpu_custom_call.1} parent=31 // pred_check_branch
          %234 = sbr.rel (%p232) target = $region44
        $region43: #{tpu_custom_call.1} parent=31 // pred_region
          %235 = vst [vmem:[#allocation2] sm:$0xff] 0.0
          %236 = vst [vmem:[#allocation2 + $0x8] sm:$0xff] 0.0
          %237 = vst [vmem:[#allocation2 + $0x10] sm:$0xff] 0.0
          %238 = vst [vmem:[#allocation2 + $0x18] sm:$0xff] 0.0
        $region44: #{tpu_custom_call.1} parent=31 // pred_fallthru
          _
        %v239 = vld [vmem:[#allocation2] sm:$0xff]
        %v240 = vld [vmem:[#allocation2 + $0x8] sm:$0xff]
        %v241 = vld [vmem:[#allocation2 + $0x10] sm:$0xff]
        %v242 = vld [vmem:[#allocation2 + $0x18] sm:$0xff]
        %v243 = vld [vmem:[%s200] sm:$0xf]
        %v244 = vld [vmem:[%s200 + $0x4] sm:$0xf]
        %v245 = vld [vmem:[%s200 + $0x8] sm:$0xf]
        %v246 = vld [vmem:[%s200 + $0xc] sm:$0xf]
        %v247 = vld [vmem:[#allocation6] sm:$0xf]
        %v248 = vld [vmem:[#allocation6 + $0x4] sm:$0xf]
        %v249 = vld [vmem:[#allocation6 + $0x8] sm:$0xf]
        %v250 = vld [vmem:[#allocation6 + $0xc] sm:$0xf]
        %v251 = vld [vmem:[#allocation6 + $0x10] sm:$0xf]
        %v252 = vld [vmem:[#allocation6 + $0x14] sm:$0xf]
        %v253 = vld [vmem:[#allocation6 + $0x18] sm:$0xf]
        %v254 = vld [vmem:[#allocation6 + $0x1c] sm:$0xf]
        %v255 = vld [vmem:[#allocation6 + $0x20] sm:$0xf]
        %v256 = vld [vmem:[#allocation6 + $0x24] sm:$0xf]
        %v257 = vld [vmem:[#allocation6 + $0x28] sm:$0xf]
        %v258 = vld [vmem:[#allocation6 + $0x2c] sm:$0xf]
        %v259 = vld [vmem:[#allocation6 + $0x30] sm:$0xf]
        %v260 = vld [vmem:[#allocation6 + $0x34] sm:$0xf]
        %v261 = vld [vmem:[#allocation6 + $0x38] sm:$0xf]
        %v262 = vld [vmem:[#allocation6 + $0x3c] sm:$0xf]
        %v267 = vunpack.c.l.b16 %v243
        %v268 = vunpack.c.l.b16 %v244
        %v269 = vunpack.c.l.b16 %v245
        %v270 = vunpack.c.l.b16 %v246
        %v271 = vpack.c.b16 %v268, %v267
        %v272 = vpack.c.b16 %v270, %v269
        %v291 = vunpack.c.l.b16 %v247
        %v292 = vunpack.c.l.b16 %v248
        %v293 = vunpack.c.l.b16 %v249
        %v294 = vunpack.c.l.b16 %v250
        %v295 = vunpack.c.l.b16 %v251
        %v296 = vunpack.c.l.b16 %v252
        %v297 = vunpack.c.l.b16 %v253
        %v298 = vunpack.c.l.b16 %v254
        %v299 = vunpack.c.l.b16 %v255
        %v300 = vunpack.c.l.b16 %v256
        %v301 = vunpack.c.l.b16 %v257
        %v302 = vunpack.c.l.b16 %v258
        %v303 = vunpack.c.l.b16 %v259
        %v304 = vunpack.c.l.b16 %v260
        %v305 = vunpack.c.l.b16 %v261
        %v306 = vunpack.c.l.b16 %v262
        %v307 = vpack.c.b16 %v292, %v291
        %v308 = vpack.c.b16 %v294, %v293
        %v309 = vpack.c.b16 %v296, %v295
        %v310 = vpack.c.b16 %v298, %v297
        %v311 = vpack.c.b16 %v300, %v299
        %v312 = vpack.c.b16 %v302, %v301
        %v313 = vpack.c.b16 %v304, %v303
        %v314 = vpack.c.b16 %v306, %v305
        %323 = vmatprep.subr.bf16.mxu0 0
        %324 = vmatpush1.bf16.msra.mxu0 %v314
        %325 = vmatprep.subr.bf16.mxu0 0
        %326 = vmatpush1.bf16.msra.mxu0 %v313
        %327 = vmatprep.subr.bf16.mxu0 0
        %328 = vmatpush1.bf16.msra.mxu0 %v312
        %329 = vmatprep.subr.bf16.mxu0 0
        %330 = vmatpush1.bf16.msra.mxu0 %v311
        %331 = vmatprep.subr.bf16.mxu0 0
        %332 = vmatpush1.bf16.msra.mxu0 %v310
        %333 = vmatprep.subr.bf16.mxu0 0
        %334 = vmatpush1.bf16.msra.mxu0 %v309
        %335 = vmatprep.subr.bf16.mxu0 0
        %336 = vmatpush1.bf16.msra.mxu0 %v308
        %337 = vmatprep.subr.bf16.mxu0 0
        %338 = vmatpush1.bf16.msra.mxu0 %v307
        %339 = vmatprep.subr.bf16.mxu0 0
        %340 = vmatpush2.bf16.msra.mxu0 0
        %341 = vmatprep.subr.bf16.mxu0 0
        %342 = vmatpush2.bf16.msra.mxu0 0
        %343 = vmatprep.subr.bf16.mxu0 0
        %344 = vmatpush2.bf16.msra.mxu0 0
        %345 = vmatprep.subr.bf16.mxu0 0
        %346 = vmatpush2.bf16.msra.mxu0 0
        %347 = vmatprep.subr.bf16.mxu0 0
        %348 = vmatpush2.bf16.msra.mxu0 0
        %349 = vmatprep.subr.bf16.mxu0 0
        %350 = vmatpush2.bf16.msra.mxu0 0
        %351 = vmatprep.subr.bf16.mxu0 0
        %352 = vmatpush2.bf16.msra.mxu0 0
        %353 = vmatprep.subr.bf16.mxu0 0
        %354 = vmatpush2.bf16.msra.mxu0 0
        %355 = vmatprep.mubr.bf16.mxu0 0
        %356 = vmatmul.mubr.bf16.gmra.mxu0 %v271
        %v357 = vpop.f32.mrf.mxu0
        %v358 = vadd.f32 0.0, %v357
        %v359 = vpop.f32.mrf.mxu0
        %v360 = vpop.f32.mrf.mxu0
        %v361 = vadd.f32 0.0, %v360
        %v362 = vpop.f32.mrf.mxu0
        %363 = vmatprep.mubr.bf16.mxu0 0
        %364 = vmatmul.mubr.bf16.gmra.mxu0 %v272
        %v365 = vpop.f32.mrf.mxu0
        %v366 = vadd.f32 0.0, %v365
        %v367 = vpop.f32.mrf.mxu0
        %v368 = vpop.f32.mrf.mxu0
        %v369 = vadd.f32 0.0, %v368
        %v370 = vpop.f32.mrf.mxu0
        %371 = vdwg.mxu0
        %v372 = vadd.f32 %v239, %v358
        %v373 = vadd.f32 %v240, %v361
        %v374 = vadd.f32 %v241, %v366
        %v375 = vadd.f32 %v242, %v369
        %376 = vst [vmem:[#allocation2] sm:$0xff] %v372
        %377 = vst [vmem:[#allocation2 + $0x8] sm:$0xff] %v373
        %378 = vst [vmem:[#allocation2 + $0x10] sm:$0xff] %v374
        %379 = vst [vmem:[#allocation2 + $0x18] sm:$0xff] %v375
        // Predicated region
        $region45: #{tpu_custom_call.1} parent=31 // pred_check
          %p380 = pneg %p231
        $region46: #{tpu_custom_call.1} parent=31 // pred_check_branch
          %382 = sbr.rel (%p380) target = $region48
        $region47: #{tpu_custom_call.1} parent=31 // pred_region
          %v383 = vld [vmem:[#allocation2] sm:$0xff]
          %v384 = vld [vmem:[#allocation2 + $0x8] sm:$0xff]
          %v385 = vld [vmem:[#allocation2 + $0x10] sm:$0xff]
          %v386 = vld [vmem:[#allocation2 + $0x18] sm:$0xff]
          %v387 = vld [vmem:[%s2] sm:$0x1]
          %v389 = vlaneseq
          %v390 = vshrl.u32 %v389, 7
          %v391 = vsub.s32 0, %v390
          %v392 = vrot.slane %v387, %v391
          %v394 = vadd.f32 %v383, %v392
          %v395 = vadd.f32 %v384, %v392
          %v396 = vadd.f32 %v385, %v392
          %v397 = vadd.f32 %v386, %v392
          %v398 = vmax.f32 %v394, 0.0
          %v399 = vmax.f32 %v395, 0.0
          %v400 = vmax.f32 %v396, 0.0
          %v401 = vmax.f32 %v397, 0.0
          %v402 = vpack.c.bf16 %v399, %v398
          %v403 = vpack.c.bf16 %v401, %v400
          %v406 = vunpack.c.l.b16 %v402
          %v407 = vunpack.c.h.b16 %v402
          %v408 = vunpack.c.l.b16 %v403
          %v409 = vunpack.c.h.b16 %v403
          %v410 = vpack.c.b16 %v406, %v406
          %v411 = vpack.c.b16 %v407, %v407
          %v412 = vpack.c.b16 %v408, %v408
          %v413 = vpack.c.b16 %v409, %v409
          %418 = vst [vmem:[%s226] sm:$0xf] %v410
          %419 = vst [vmem:[%s226 + $0x4] sm:$0xf] %v411
          %420 = vst [vmem:[%s226 + $0x8] sm:$0xf] %v412
          %421 = vst [vmem:[%s226 + $0xc] sm:$0xf] %v413
        $region48: #{tpu_custom_call.1} parent=31 // pred_fallthru
          _
        %s422 = sand.u32 %s116, 1
        %s423 = scalar_lea.sflag [#allocation5], %s422
        %s424 = sand.u32 %s116, 1
        %s425 = smul.addr %s424, 16
        %s426 = scalar_lea.vmem [#allocation8], %s425
        // Predicated region
        $region49: #{tpu_custom_call.1} parent=31 // pred_check
          %p427 = pneg %p126
        $region50: #{tpu_custom_call.1} parent=31 // pred_check_branch
          %429 = sbr.rel (%p427) target = $region52
        $region51: #{tpu_custom_call.1} parent=31 // pred_region
          %s430 = smul.u32 4, %s25
          %s432 = ssub.s32 256, 256
          %433 = vsyncadd %s423, %s432
          %s434 = smul.addr %s430, 64
          %s435 = scalar_lea.hbm %s3, %s434
          %s436 = sshll.u32 %s426, 4
          %s437 = int_to_ptr.vmem [resolvable:$true] %s436
          %442 = dma.vmem_to_hbm [thread:$0]  %s437, 256, %s435, %s423, 64, 64, 4
        $region52: #{tpu_custom_call.1} parent=31 // pred_fallthru
          _
      $region32: #{tpu_custom_call.1} parent=5 // pred_fallthru
        _
      %p443 = scmp.le.s32.totalorder 2, %s16
      // Predicated region
      $region53: #{tpu_custom_call.1} parent=5 // pred_check
        %p444 = pneg %p443
      $region54: #{tpu_custom_call.1} parent=5 // pred_check_branch
        %446 = sbr.rel (%p444) target = $region56
      $region55: #{tpu_custom_call.1} parent=5 // pred_region
        %s447 = ssub.s32 %s16, 2
        // Predicated region
        $region57: #{tpu_custom_call.1} parent=55 // pred_check
          %p448 = pneg %p132
        $region58: #{tpu_custom_call.1} parent=55 // pred_check_branch
          %450 = sbr.rel (%p448) target = $region60
        $region59: #{tpu_custom_call.1} parent=55 // pred_region
          %s451 = sand.u32 %s117, 1
          %s452 = scalar_lea.sflag [#allocation5], %s451
          %s453 = sand.u32 %s117, 1
          %s454 = smul.addr %s453, 16
          %s455 = scalar_lea.vmem [#allocation8], %s454
          %456 = dma.done %s452, 256
        $region60: #{tpu_custom_call.1} parent=55 // pred_fallthru
          _
      $region56: #{tpu_custom_call.1} parent=5 // pred_fallthru
        _
    $region6: #{tpu_custom_call.1} parent=1 // loop_footer
      %s20 = sadd.s32 1, %s16
    $region7: #{tpu_custom_call.1} parent=1 // loop_footer_branch
      %15 = sbr.rel target = $region3
    $region8: #{tpu_custom_call.1} parent=1 // loop_exit
      _
    %457 = vsyncpa [#allocation4], 1
    %s458 = scalar_lea.sflag [#allocation4], 1
    %459 = vsyncpa %s458, 1
    %460 = vsyncpa [#allocation7], 1
    %461 = vsyncpa [#allocation5], 1
    %s462 = scalar_lea.sflag [#allocation5], 1
    %463 = vsyncpa %s462, 1

</llo_original>
